<compile_context>
chip_gen: v7x
topology: tpu7x:2x2x1
jax: 0.10.0
libtpu: 0.0.40
codegen_flags: <defaults>
</compile_context>

<pallas_src>
import functools
import math

import jax
import jax.numpy as jnp
from jax import lax
from jax.experimental import pallas as pl
from jax.experimental.pallas import tpu as pltpu


@functools.lru_cache(maxsize=None)
def _budget():
    """Generation-aware VMEM / tile budget (v5e/v6e: 128 MiB VMEM, v7x: 64 MiB per core)."""
    vmem_bytes = 64 * 1024 * 1024  # conservative fallback (v7x-sized)
    try:
        vmem_bytes = pltpu.get_tpu_info().vmem_capacity_bytes
    except Exception:
        pass
    big = vmem_bytes >= 100 * 1024 * 1024
    return {
        "vmem_limit": (100 if big else 44) * 1024 * 1024,
        "tm": 256,                      # rows (B*S)
        "tn": 1024 if big else 512,     # lm_head output columns
        "tk": 1024 if big else 512,     # lm_head reduction
        "tq": 256,                      # attention query rows
        "tkv": 256,                     # attention key/value rows
        "tf": 256,                      # d_ff tile inside fused FFN
    }


def _tile(dim, target):
    """Largest legal tile: the target if it divides `dim`, else the full dim (always legal)."""
    t = min(dim, target)
    return t if dim % t == 0 else dim


# ----------------------------- generic tiled linear (lm_head) -----------------------------

def _linear_kernel(x_ref, w_ref, b_ref, o_ref, acc_ref):
    k = pl.program_id(2)

    @pl.when(k == 0)
    def _():
        acc_ref[...] = jnp.zeros_like(acc_ref)

    acc_ref[...] += jnp.dot(x_ref[...], w_ref[...], preferred_element_type=jnp.float32)

    @pl.when(k == pl.num_programs(2) - 1)
    def _():
        o_ref[...] = (acc_ref[...] + b_ref[...]).astype(o_ref.dtype)


def linear(x, w, b):
    cfg = _budget()
    M, K = x.shape
    N = w.shape[1]
    Np = N
    if N > 128 and N % 128 != 0:  # pad vocab -> lane-dense tiles, bounded VMEM (e.g. 50257)
        Np = ((N + 127) // 128) * 128
        w = jnp.pad(w, ((0, 0), (0, Np - N)))
        b = jnp.pad(b, (0, Np - N))
    tm, tn, tk = _tile(M, cfg["tm"]), _tile(Np, cfg["tn"]), _tile(K, cfg["tk"])
    out = pl.pallas_call(
        _linear_kernel,
        out_shape=jax.ShapeDtypeStruct((M, Np), jnp.float32),
        grid=(M // tm, Np // tn, K // tk),
        in_specs=[pl.BlockSpec((tm, tk), lambda i, j, k: (i, k)),
                  pl.BlockSpec((tk, tn), lambda i, j, k: (k, j)),
                  pl.BlockSpec((1, tn), lambda i, j, k: (0, j))],
        out_specs=pl.BlockSpec((tm, tn), lambda i, j, k: (i, j)),
        scratch_shapes=[pltpu.VMEM((tm, tn), jnp.float32)],
        compiler_params=pltpu.CompilerParams(
            dimension_semantics=("parallel", "parallel", "arbitrary"),
            vmem_limit_bytes=cfg["vmem_limit"]),
    )(x, w, b.reshape(1, Np))
    return out[:, :N] if Np != N else out


# ----------------------------- fused QKV projection (scale folded into Q) -----------------------------

def _qkv_kernel(x_ref, w_ref, b_ref, q_ref, k_ref, v_ref, *, scale):
    g = pl.program_id(1)
    y = jnp.dot(x_ref[...], w_ref[...], preferred_element_type=jnp.float32) + b_ref[...]

    @pl.when(g == 0)
    def _():
        q_ref[...] = (y * scale).astype(q_ref.dtype)   # fold 1/sqrt(dh) into Q

    @pl.when(g == 1)
    def _():
        k_ref[...] = y.astype(k_ref.dtype)

    @pl.when(g == 2)
    def _():
        v_ref[...] = y.astype(v_ref.dtype)


def qkv_proj(x, w3, b3, scale):
    cfg = _budget()
    M, D = x.shape
    tm = _tile(M, cfg["tm"])
    sds = jax.ShapeDtypeStruct((M, D), jnp.bfloat16)
    row = pl.BlockSpec((tm, D), lambda i, g: (i, 0))    # x / q / k / v: resident across g
    return pl.pallas_call(
        functools.partial(_qkv_kernel, scale=scale),
        out_shape=(sds, sds, sds),
        grid=(M // tm, 3),
        in_specs=[row,
                  pl.BlockSpec((None, D, D), lambda i, g: (g, 0, 0)),
                  pl.BlockSpec((None, 1, D), lambda i, g: (g, 0, 0))],
        out_specs=(row, row, row),
        compiler_params=pltpu.CompilerParams(
            dimension_semantics=("parallel", "arbitrary"),
            vmem_limit_bytes=cfg["vmem_limit"]),
    )(x, w3, b3.reshape(3, 1, D))


# ----------------------------- flash-style causal attention -----------------------------

def _flash_attn_kernel(q_ref, k_ref, v_ref, o_ref, m_sc, l_sc, acc_sc, *, nhead):
    tq, D = q_ref.shape
    tk = k_ref.shape[0]
    dh = D // nhead

    qi = pl.program_id(1)
    ki = pl.program_id(2)
    last_kv = ((qi + 1) * tq - 1) // tk          # last kv block with any unmasked position

    @pl.when(ki == 0)
    def _():
        m_sc[...] = jnp.full(m_sc.shape, -jnp.inf, m_sc.dtype)
        l_sc[...] = jnp.zeros_like(l_sc)
        acc_sc[...] = jnp.zeros_like(acc_sc)

    @pl.when(ki <= last_kv)                      # fully-masked blocks: no compute (and no DMA, see kvspec)
    def _():
        q = q_ref[...].reshape(tq, nhead, dh)
        k = k_ref[...].reshape(tk, nhead, dh)
        v = v_ref[...].reshape(tk, nhead, dh)
        # contract head_dim directly (no explicit K transpose); batched over heads
        # TODO(synk): dh < 128 underfills the MXU K-dimension; fold heads for larger models.
        s = jnp.einsum("qhd,khd->hqk", q, k, preferred_element_type=jnp.float32)

        def _mask(t):
            row = qi * tq + lax.broadcasted_iota(jnp.int32, t.shape, 1)
            col = ki * tk + lax.broadcasted_iota(jnp.int32, t.shape, 2)
            return jnp.where(col > row, -1e30, t)

        # mask only blocks that straddle the diagonal; off-diagonal blocks skip the VPU passes
        s = lax.cond((ki + 1) * tk - 1 > qi * tq, _mask, lambda t: t, s)

        m_prev = m_sc[...]
        m_new = jnp.maximum(m_prev, jnp.max(s, axis=-1))
        alpha = jnp.exp(m_prev - m_new)
        p = jnp.exp(s - m_new[:, :, None])
        l_sc[...] = alpha * l_sc[...] + jnp.sum(p, axis=-1)
        acc_sc[...] = alpha[:, :, None] * acc_sc[...] + jnp.einsum(
            "hqk,khd->hqd", p.astype(v.dtype), v, preferred_element_type=jnp.float32)
        m_sc[...] = m_new

    @pl.when(ki == last_kv)
    def _():
        inv_l = pl.reciprocal(l_sc[...], approx=False)
        out = acc_sc[...] * inv_l[:, :, None]                      # (H, tq, dh)
        o_ref[...] = jnp.transpose(out, (1, 0, 2)).reshape(tq, D).astype(o_ref.dtype)


def flash_attention(q, k, v, nhead):
    cfg = _budget()
    B, S, D = q.shape
    tq = _tile(S, cfg["tq"])
    tk = _tile(S, cfg["tkv"])
    dh = D // nhead
    qspec = pl.BlockSpec((None, tq, D), lambda b, i, j: (b, i, 0))
    # clamp kv block index to the diagonal block: fully-masked upper-triangular tiles are never DMA'd
    kvspec = pl.BlockSpec(
        (None, tk, D), lambda b, i, j: (b, jnp.minimum(j, ((i + 1) * tq - 1) // tk), 0))
    return pl.pallas_call(
        functools.partial(_flash_attn_kernel, nhead=nhead),
        out_shape=jax.ShapeDtypeStruct((B, S, D), jnp.bfloat16),
        grid=(B, S // tq, S // tk),
        in_specs=[qspec, kvspec, kvspec],
        out_specs=pl.BlockSpec((None, tq, D), lambda b, i, j: (b, i, 0)),
        scratch_shapes=[pltpu.VMEM((nhead, tq), jnp.float32),
                        pltpu.VMEM((nhead, tq), jnp.float32),
                        pltpu.VMEM((nhead, tq, dh), jnp.float32)],
        compiler_params=pltpu.CompilerParams(
            dimension_semantics=("parallel", "parallel", "arbitrary"),
            vmem_limit_bytes=cfg["vmem_limit"]),
    )(q, k, v)


# ----------------------------- out_proj + residual + LayerNorm -----------------------------

def _out_proj_ln_kernel(a_ref, w_ref, b_ref, res_ref, g_ref, be_ref, o_ref):
    y = (jnp.dot(a_ref[...], w_ref[...], preferred_element_type=jnp.float32)
         + b_ref[...] + res_ref[...].astype(jnp.float32))
    mean = jnp.mean(y, axis=-1, keepdims=True)
    var = jnp.mean((y - mean) ** 2, axis=-1, keepdims=True)
    o_ref[...] = ((y - mean) * lax.rsqrt(var + 1e-5) * g_ref[...] + be_ref[...]).astype(o_ref.dtype)


def out_proj_residual_ln(attn, w, b, resid, gamma, beta):
    cfg = _budget()
    M, D = attn.shape
    tm = _tile(M, cfg["tm"])
    row = pl.BlockSpec((tm, D), lambda i: (i, 0))
    vec = pl.BlockSpec((1, D), lambda i: (0, 0))
    return pl.pallas_call(
        _out_proj_ln_kernel,
        out_shape=jax.ShapeDtypeStruct((M, D), jnp.bfloat16),
        grid=(M // tm,),
        in_specs=[row, pl.BlockSpec((D, D), lambda i: (0, 0)), vec, row, vec, vec],
        out_specs=row,
        compiler_params=pltpu.CompilerParams(
            dimension_semantics=("parallel",),
            vmem_limit_bytes=cfg["vmem_limit"]),
    )(attn, w, b.reshape(1, D), resid, gamma.reshape(1, D), beta.reshape(1, D))


# ----------------------------- FFN (ReLU) + residual + LayerNorm -----------------------------

def _ffn_ln_kernel(x_ref, w1_ref, b1_ref, w2_ref, b2_ref, g_ref, be_ref, o_ref, acc_ref):
    f = pl.program_id(1)

    @pl.when(f == 0)
    def _():
        acc_ref[...] = jnp.zeros_like(acc_ref)

    h = jnp.dot(x_ref[...], w1_ref[...], preferred_element_type=jnp.float32) + b1_ref[...]
    h = jnp.maximum(h, 0.0).astype(jnp.bfloat16)   # feed bf16 into the second MXU pass
    acc_ref[...] += jnp.dot(h, w2_ref[...], preferred_element_type=jnp.float32)

    @pl.when(f == pl.num_programs(1) - 1)
    def _():
        y = acc_ref[...] + b2_ref[...] + x_ref[...].astype(jnp.float32)   # bias + residual
        mean = jnp.mean(y, axis=-1, keepdims=True)
        var = jnp.mean((y - mean) ** 2, axis=-1, keepdims=True)
        o_ref[...] = ((y - mean) * lax.rsqrt(var + 1e-5) * g_ref[...]
                      + be_ref[...]).astype(o_ref.dtype)


def ffn_residual_ln(x, w1, b1, w2, b2, gamma, beta):
    cfg = _budget()
    M, D = x.shape
    F = w1.shape[1]
    tm, tf = _tile(M, cfg["tm"]), _tile(F, cfg["tf"])
    row = pl.BlockSpec((tm, D), lambda i, f: (i, 0))
    vec_d = pl.BlockSpec((1, D), lambda i, f: (0, 0))
    return pl.pallas_call(
        _ffn_ln_kernel,
        out_shape=jax.ShapeDtypeStruct((M, D), jnp.bfloat16),
        grid=(M // tm, F // tf),
        in_specs=[row,
                  pl.BlockSpec((D, tf), lambda i, f: (0, f)),
                  pl.BlockSpec((1, tf), lambda i, f: (0, f)),
                  pl.BlockSpec((tf, D), lambda i, f: (f, 0)),
                  vec_d, vec_d, vec_d],
        out_specs=row,
        scratch_shapes=[pltpu.VMEM((tm, D), jnp.float32)],
        compiler_params=pltpu.CompilerParams(
            dimension_semantics=("parallel", "arbitrary"),
            vmem_limit_bytes=cfg["vmem_limit"]),
    )(x, w1, b1.reshape(1, F), w2, b2.reshape(1, D), gamma.reshape(1, D), beta.reshape(1, D))


# ----------------------------- model forward -----------------------------

def transformer_forward(tokens, params, nhead):
    B, S = tokens.shape
    D = params["embedding"].shape[1]
    dh = D // nhead
    scale = 1.0 / math.sqrt(dh)
    # token + positional embedding (gather is glue; kept in plain JAX), then bf16 activations
    x = params["embedding"][tokens] + params["pos_embedding"][:S][None, :, :]
    x2d = x.reshape(B * S, D).astype(jnp.bfloat16)
    for p in params["layers"]:
        q, k, v = qkv_proj(x2d, p["qkv_w"], p["qkv_b"], scale)
        attn = flash_attention(q.reshape(B, S, D), k.reshape(B, S, D),
                               v.reshape(B, S, D), nhead)
        h = out_proj_residual_ln(attn.reshape(B * S, D), p["out_proj_w"], p["out_proj_b"],
                                 x2d, p["ln1_g"], p["ln1_b"])
        x2d = ffn_residual_ln(h, p["ffn_w1"], p["ffn_b1"], p["ffn_w2"], p["ffn_b2"],
                              p["ln2_g"], p["ln2_b"])
    logits = linear(x2d, params["lm_head_w"], params["lm_head_b"])
    return logits.reshape(B, S, -1)


# ----------------------------- pure-JAX reference (correctness check) -----------------------------

def reference_forward(tokens, params, nhead):
    f32 = lambda a: a.astype(jnp.float32)
    B, S = tokens.shape
    x = params["embedding"][tokens] + params["pos_embedding"][:S][None, :, :]
    D = x.shape[-1]
    H, Dh = nhead, D // nhead
    mask = jnp.triu(jnp.ones((S, S), bool), k=1)

    def ln(y, g, b):
        m = y.mean(-1, keepdims=True)
        v = ((y - m) ** 2).mean(-1, keepdims=True)
        return (y - m) / jnp.sqrt(v + 1e-5) * g + b

    for p in params["layers"]:
        q = x @ f32(p["qkv_w"][0]) + p["qkv_b"][0]
        k = x @ f32(p["qkv_w"][1]) + p["qkv_b"][1]
        v = x @ f32(p["qkv_w"][2]) + p["qkv_b"][2]
        qh = q.reshape(B, S, H, Dh).transpose(0, 2, 1, 3)
        kh = k.reshape(B, S, H, Dh).transpose(0, 2, 1, 3)
        vh = v.reshape(B, S, H, Dh).transpose(0, 2, 1, 3)
        s = (qh @ kh.transpose(0, 1, 3, 2)) / math.sqrt(Dh)
        s = jnp.where(mask, -jnp.inf, s)
        a = jax.nn.softmax(s, axis=-1)
        attn = (a @ vh).transpose(0, 2, 1, 3).reshape(B, S, D)
        h = ln(x + attn @ f32(p["out_proj_w"]) + p["out_proj_b"], p["ln1_g"], p["ln1_b"])
        ff = jnp.maximum(h @ f32(p["ffn_w1"]) + p["ffn_b1"], 0.0) @ f32(p["ffn_w2"]) + p["ffn_b2"]
        x = ln(h + ff, p["ln2_g"], p["ln2_b"])
    return x @ f32(params["lm_head_w"]) + params["lm_head_b"]


# ----------------------------- parameter init -----------------------------

def init_params(key, vocab, d_model, nhead, num_layers, d_ff, max_len):
    scale = 0.02
    keys = jax.random.split(key, 3 + num_layers)
    params = {
        "embedding": scale * jax.random.normal(keys[0], (vocab, d_model), jnp.float32),
        "pos_embedding": scale * jax.random.normal(keys[1], (max_len, d_model), jnp.float32),
        "lm_head_w": scale * jax.random.normal(keys[2], (d_model, vocab), jnp.float32),
        "lm_head_b": jnp.zeros((vocab,), jnp.float32),
        "layers": [],
    }
    for l in range(num_layers):
        k = jax.random.split(keys[3 + l], 8)
        layer = {
            # qkv_w[i] == in_proj_weight[i*D:(i+1)*D, :].T  (q | k | v)
            "qkv_w": scale * jax.random.normal(k[0], (3, d_model, d_model), jnp.float32),
            "qkv_b": scale * jax.random.normal(k[1], (3, d_model), jnp.float32),
            "out_proj_w": scale * jax.random.normal(k[2], (d_model, d_model), jnp.float32),
            "out_proj_b": scale * jax.random.normal(k[3], (d_model,), jnp.float32),
            "ln1_g": jnp.ones((d_model,), jnp.float32),
            "ln1_b": jnp.zeros((d_model,), jnp.float32),
            "ffn_w1": scale * jax.random.normal(k[4], (d_model, d_ff), jnp.float32),
            "ffn_b1": scale * jax.random.normal(k[5], (d_ff,), jnp.float32),
            "ffn_w2": scale * jax.random.normal(k[6], (d_ff, d_model), jnp.float32),
            "ffn_b2": scale * jax.random.normal(k[7], (d_model,), jnp.float32),
            "ln2_g": jnp.ones((d_model,), jnp.float32),
            "ln2_b": jnp.zeros((d_model,), jnp.float32),
        }
        params["layers"].append(layer)
    return params


def cast_matmul_weights_to_bf16(params):
    """Store MXU-operand weights in bf16 (biases / LN params stay f32)."""
    out = dict(params)
    out["lm_head_w"] = params["lm_head_w"].astype(jnp.bfloat16)
    out["layers"] = []
    for p in params["layers"]:
        q = dict(p)
        for name in ("qkv_w", "out_proj_w", "ffn_w1", "ffn_w2"):
            q[name] = p[name].astype(jnp.bfloat16)
        out["layers"].append(q)
    return out


# --------------------------------- main ---------------------------------

if __name__ == "__main__":
    vocab_size, d_model, nhead, num_layers, d_ff, max_len = 32, 32, 4, 2, 64, 16
    B, S = 2, 8

    root = jax.random.PRNGKey(0)
    pkey, tkey = jax.random.split(root)
    params = cast_matmul_weights_to_bf16(
        init_params(pkey, vocab_size, d_model, nhead, num_layers, d_ff, max_len))
    tokens = jax.random.randint(tkey, (B, S), 0, vocab_size, dtype=jnp.int32)

    logits = transformer_forward(tokens, params, nhead)
    logits = jax.block_until_ready(logits)
    assert logits.shape == (B, S, vocab_size), logits.shape
    assert bool(jnp.all(jnp.isfinite(logits)))

    ref = reference_forward(tokens, params, nhead)   # same bf16-stored weights, f32 math
    err = float(jnp.max(jnp.abs(logits - ref)))
    assert err < 2e-2, f"max abs error vs reference: {err}"   # bf16-activation tolerance

    print("KERNEL_OK")
</pallas_src>

<mosaic_0001>
module attributes {stable_mosaic.version = 11 : i64} {
  func.func @_qkv_kernel(%arg0: i32, %arg1: i32, %arg2: memref<16x32xbf16, #tpu.memory_space<vmem>>, %arg3: memref<1x32x32xbf16, #tpu.memory_space<vmem>>, %arg4: memref<1x1x32xf32, #tpu.memory_space<vmem>>, %arg5: memref<16x32xbf16, #tpu.memory_space<vmem>>, %arg6: memref<16x32xbf16, #tpu.memory_space<vmem>>, %arg7: memref<16x32xbf16, #tpu.memory_space<vmem>>) attributes {dimension_semantics = [#tpu.dimension_semantics<parallel>, #tpu.dimension_semantics<arbitrary>], iteration_bounds = array<i64: 1, 3>, scalar_prefetch = 0 : i64, scratch_operands = 0 : i64, tpu.core_type = #tpu.core_type<tc>, window_params = [{transform_indices = @transform_0, window_bounds = array<i64: 16, 32>}, {transform_indices = @transform_1, window_bounds = array<i64: 1, 32, 32>}, {transform_indices = @transform_2, window_bounds = array<i64: 1, 1, 32>}, {transform_indices = @transform_3, window_bounds = array<i64: 16, 32>}, {transform_indices = @transform_4, window_bounds = array<i64: 16, 32>}, {transform_indices = @transform_5, window_bounds = array<i64: 16, 32>}]} {
    %c0 = arith.constant 0 : index
    %c0_0 = arith.constant 0 : index
    %0 = vector.load %arg2[%c0, %c0_0] : memref<16x32xbf16, #tpu.memory_space<vmem>>, vector<16x32xbf16>
    %c0_1 = arith.constant 0 : index
    %c0_2 = arith.constant 0 : index
    %c0_3 = arith.constant 0 : index
    %1 = vector.load %arg3[%c0_1, %c0_2, %c0_3] : memref<1x32x32xbf16, #tpu.memory_space<vmem>>, vector<1x32x32xbf16>
    %2 = vector.shape_cast %1 : vector<1x32x32xbf16> to vector<32x32xbf16>
    %cst = arith.constant dense<0.000000e+00> : vector<16x32xf32>
    %3 = tpu.matmul %0, %2, %cst {dimension_numbers = #tpu.dot_dimension_numbers<[1], [0], [0], [1], [0, 0, 1, 1], [], []>} : vector<16x32xbf16>, vector<32x32xbf16>, vector<16x32xf32> -> vector<16x32xf32>
    %c0_4 = arith.constant 0 : index
    %c0_5 = arith.constant 0 : index
    %c0_6 = arith.constant 0 : index
    %4 = vector.load %arg4[%c0_4, %c0_5, %c0_6] : memref<1x1x32xf32, #tpu.memory_space<vmem>>, vector<1x1x32xf32>
    %5 = vector.shape_cast %4 : vector<1x1x32xf32> to vector<1x32xf32>
    %6 = vector.broadcast %5 : vector<1x32xf32> to vector<16x32xf32>
    %7 = arith.addf %3, %6 : vector<16x32xf32>
    %c0_i32 = arith.constant 0 : i32
    %8 = arith.cmpi eq, %arg1, %c0_i32 : i32
    %9 = arith.extui %8 : i1 to i32
    %c0_i32_7 = arith.constant 0 : i32
    %10 = arith.cmpi ne, %9, %c0_i32_7 : i32
    scf.if %10 {
      %cst_10 = arith.constant 0.353553385 : f32
      %17 = vector.broadcast %cst_10 : f32 to vector<16x32xf32>
      %18 = arith.mulf %7, %17 : vector<16x32xf32>
      %19 = arith.truncf %18 : vector<16x32xf32> to vector<16x32xbf16>
      %c0_11 = arith.constant 0 : index
      %c0_12 = arith.constant 0 : index
      %20 = vector.load %arg5[%c0_11, %c0_12] : memref<16x32xbf16, #tpu.memory_space<vmem>>, vector<16x32xbf16>
      tpu.vector_store %arg5[%c0_11, %c0_12], %19 {strides = array<i32>} : memref<16x32xbf16, #tpu.memory_space<vmem>>, vector<16x32xbf16>,
    } else {
    }
    %c1_i32 = arith.constant 1 : i32
    %11 = arith.cmpi eq, %arg1, %c1_i32 : i32
    %12 = arith.extui %11 : i1 to i32
    %c0_i32_8 = arith.constant 0 : i32
    %13 = arith.cmpi ne, %12, %c0_i32_8 : i32
    scf.if %13 {
      %17 = arith.truncf %7 : vector<16x32xf32> to vector<16x32xbf16>
      %c0_10 = arith.constant 0 : index
      %c0_11 = arith.constant 0 : index
      %18 = vector.load %arg6[%c0_10, %c0_11] : memref<16x32xbf16, #tpu.memory_space<vmem>>, vector<16x32xbf16>
      tpu.vector_store %arg6[%c0_10, %c0_11], %17 {strides = array<i32>} : memref<16x32xbf16, #tpu.memory_space<vmem>>, vector<16x32xbf16>,
    } else {
    }
    %c2_i32 = arith.constant 2 : i32
    %14 = arith.cmpi eq, %arg1, %c2_i32 : i32
    %15 = arith.extui %14 : i1 to i32
    %c0_i32_9 = arith.constant 0 : i32
    %16 = arith.cmpi ne, %15, %c0_i32_9 : i32
    scf.if %16 {
      %17 = arith.truncf %7 : vector<16x32xf32> to vector<16x32xbf16>
      %c0_10 = arith.constant 0 : index
      %c0_11 = arith.constant 0 : index
      %18 = vector.load %arg7[%c0_10, %c0_11] : memref<16x32xbf16, #tpu.memory_space<vmem>>, vector<16x32xbf16>
      tpu.vector_store %arg7[%c0_10, %c0_11], %17 {strides = array<i32>} : memref<16x32xbf16, #tpu.memory_space<vmem>>, vector<16x32xbf16>,
    } else {
    }
    return
  }
  func.func @transform_0(%arg0: i32, %arg1: i32) -> (i32, i32) {
    %c0_i32 = arith.constant 0 : i32
    %c0_i32_0 = arith.constant 0 : i32
    return %arg0, %c0_i32 : i32, i32
  }
  func.func @transform_1(%arg0: i32, %arg1: i32) -> (i32, i32, i32) {
    %c0_i32 = arith.constant 0 : i32
    %c0_i32_0 = arith.constant 0 : i32
    %c0_i32_1 = arith.constant 0 : i32
    return %arg1, %c0_i32, %c0_i32_0 : i32, i32, i32
  }
  func.func @transform_2(%arg0: i32, %arg1: i32) -> (i32, i32, i32) {
    %c0_i32 = arith.constant 0 : i32
    %c0_i32_0 = arith.constant 0 : i32
    %c0_i32_1 = arith.constant 0 : i32
    return %arg1, %c0_i32, %c0_i32_0 : i32, i32, i32
  }
  func.func @transform_3(%arg0: i32, %arg1: i32) -> (i32, i32) {
    %c0_i32 = arith.constant 0 : i32
    %c0_i32_0 = arith.constant 0 : i32
    return %arg0, %c0_i32 : i32, i32
  }
  func.func @transform_4(%arg0: i32, %arg1: i32) -> (i32, i32) {
    %c0_i32 = arith.constant 0 : i32
    %c0_i32_0 = arith.constant 0 : i32
    return %arg0, %c0_i32 : i32, i32
  }
  func.func @transform_5(%arg0: i32, %arg1: i32) -> (i32, i32) {
    %c0_i32 = arith.constant 0 : i32
    %c0_i32_0 = arith.constant 0 : i32
    return %arg0, %c0_i32 : i32, i32
  }
}

</mosaic_0001>

<llo_original>
// kernel: tpu_custom_call.1
$region0: #{tpu_custom_call.1}
  #allocation0 [shape = 'u32[]', space=smem, size = 0x4, offset = 0x4, fixed_abs, tag = 'smem constant byte address 0x4 - core index']
  #allocation1 [shape = 'u32[144,128]{1,0:T(1,128)}', space=vmem, size = 0x12000, scoped, tag = 'internal scratch']
  %s0 = inlined_call_operand.hbm [shape: bf16[16,32], index: 0, kind: input, shape index: {}]
  %s1 = inlined_call_operand.hbm [shape: bf16[3,32,32], index: 1, kind: input, shape index: {}]
  %s2 = inlined_call_operand.vmem [shape: f32[3,1,32], index: 2, kind: input, shape index: {}]
  %s3 = inlined_call_operand.hbm [shape: bf16[16,32], index: 3, kind: output, shape index: {0}]
  %s4 = inlined_call_operand.hbm [shape: bf16[16,32], index: 4, kind: output, shape index: {1}]
  %s5 = inlined_call_operand.hbm [shape: bf16[16,32], index: 5, kind: output, shape index: {2}]
  %6 = xla_tuple %s3, %s4, %s5
  %s7 = sld [smem:[#allocation0]]
  $region81: #{tpu_custom_call.1} parent=0
    _
  %s9 = ssub.s32 1, %s7
  %s10 = scalar_select 0, %s9, %s7
  $region1: #{tpu_custom_call.1} parent=0
    #allocation2 [shape = 'u8[4096]{0}', space=vmem, size = 0x1000, scoped, tag = 'input window, operand 0, single buffered']
    #allocation3 [shape = 's32[2]{0}', space=sflag, size = 0x8, scoped, tag = 'scoped memory for tpu_custom_call.1']
    #allocation4 [shape = 's32[2]{0}', space=sflag, size = 0x8, scoped, tag = 'scoped memory for tpu_custom_call.1']
    #allocation5 [shape = 'u8[16384]{0}', space=vmem, size = 0x4000, scoped, tag = 'input window, operand 1']
    #allocation6 [shape = 's32[2]{0}', space=sflag, size = 0x8, scoped, tag = 'scoped memory for tpu_custom_call.1']
    #allocation7 [shape = 'u8[4096]{0}', space=vmem, size = 0x1000, scoped, tag = 'output window, operand 0, single buffered']
    #allocation8 [shape = 'u8[4096]{0}', space=vmem, size = 0x1000, scoped, tag = 'output window, operand 1, single buffered']
    #allocation9 [shape = 's32[1]{0}', space=sflag, size = 0x4, scoped, tag = 'scoped memory for tpu_custom_call.1']
    #allocation10 [shape = 'u8[4096]{0}', space=vmem, size = 0x1000, scoped, tag = 'output window, operand 2, single buffered']
    %11 = vsyncpa [#allocation3], 0
    %12 = vsyncpa [#allocation6], 0
    %s13 = scalar_lea.sflag [#allocation6], 1
    %14 = vsyncpa %s13, 0
    %15 = vsyncpa [#allocation4], 0
    %16 = vsyncpa [#allocation9], 0
    loop: start=0, step=1, limit=5
    $region2: #{tpu_custom_call.1} parent=1 // loop_pre_header
      _
    $region3: #{tpu_custom_call.1} parent=1 // loop_header
      %s18 = sphi 0, %s22
      %p19 = scmp.ge.s32.totalorder %s18, 5
      %s25 = sphi 0, %s37
      %s26 = sphi 0, %s33
      %s27 = sphi 0, %s25
      %s28 = sphi 0, %s26
      %s29 = sphi 0, %s27
      %s30 = sphi 0, %s28
      %s40 = sphi 0, %s42
      %s43 = sphi 0, %s40
      %s44 = sphi 0, %s43
      %s60 = sphi 0, %s44
      %s66 = sphi 0, %s68
      %s69 = sphi 0, %s66
      %s70 = sphi 0, %s69
      %s86 = sphi 0, %s70
      %s92 = sphi 0, %s94
      %s95 = sphi 0, %s92
      %s96 = sphi 0, %s95
      %s112 = sphi 0, %s96
      %s118 = sphi 0, %s120
      %s121 = sphi 0, %s118
      %s122 = sphi 0, %s121
      %s138 = sphi 0, %s122
      %s144 = sphi 0, %s146
      %s147 = sphi 0, %s144
      %s148 = sphi 0, %s147
      %s164 = sphi 0, %s148
      %s170 = sphi 0, %s172
      %s173 = sphi 0, %s170
      %s174 = sphi 0, %s173
      %s190 = sphi 0, %s174
    $region4: #{tpu_custom_call.1} parent=1 // loop_header_branch
      %21 = sbr.rel (%p19) target = $region8
    $region5: #{tpu_custom_call.1} parent=1 // loop_body
      %s23 = ssub.s32 %s18, 1
      %s24 = ssub.s32 %s18, 2
      %s31 = sadd.s32 1, %s26
      %p32 = scmp.ge.s32.totalorder %s31, 3
      %s33 = scalar_select %p32, 0, %s31
      %s34 = sadd.s32 1, %s25
      %s35 = scalar_select %p32, %s34, %s25
      %p36 = scmp.ge.s32.totalorder %s35, 1
      %s37 = scalar_select %p36, 0, %s35
      %s38 = ssub.s32 %s25, %s37
      %p39 = scmp.eq.s32.totalorder %s38, 0
      %s41 = sadd.s32 %s40, 1
      %s42 = scalar_select %p39, %s40, %s41
      %p45 = pneg %p39
      %p46 = scmp.eq.s32.totalorder %s18, 2
      %p47 = por %p45, %p46
      %p48 = scmp.ne.s32.totalorder %s40, %s43
      %p49 = scmp.eq.s32.totalorder %s18, 0
      %p50 = por %p48, %p49
      %p51 = scmp.ne.s32.totalorder %s40, %s43
      %p52 = scmp.eq.s32.totalorder %s23, 2
      %p53 = por %p51, %p52
      %p54 = scmp.ne.s32.totalorder %s43, %s44
      %p55 = scmp.eq.s32.totalorder %s23, 0
      %p56 = por %p54, %p55
      %p57 = scmp.ne.s32.totalorder %s43, %s44
      %p58 = scmp.eq.s32.totalorder %s24, 2
      %p59 = por %p57, %p58
      %p61 = scmp.ne.s32.totalorder %s44, %s60
      %p62 = scmp.eq.s32.totalorder %s24, 0
      %p63 = por %p61, %p62
      %s64 = ssub.s32 %s26, %s33
      %p65 = scmp.eq.s32.totalorder %s64, 0
      %s67 = sadd.s32 %s66, 1
      %s68 = scalar_select %p65, %s66, %s67
      %p71 = pneg %p65
      %p72 = scmp.eq.s32.totalorder %s18, 2
      %p73 = por %p71, %p72
      %p74 = scmp.ne.s32.totalorder %s66, %s69
      %p75 = scmp.eq.s32.totalorder %s18, 0
      %p76 = por %p74, %p75
      %p77 = scmp.ne.s32.totalorder %s66, %s69
      %p78 = scmp.eq.s32.totalorder %s23, 2
      %p79 = por %p77, %p78
      %p80 = scmp.ne.s32.totalorder %s69, %s70
      %p81 = scmp.eq.s32.totalorder %s23, 0
      %p82 = por %p80, %p81
      %p83 = scmp.ne.s32.totalorder %s69, %s70
      %p84 = scmp.eq.s32.totalorder %s24, 2
      %p85 = por %p83, %p84
      %p87 = scmp.ne.s32.totalorder %s70, %s86
      %p88 = scmp.eq.s32.totalorder %s24, 0
      %p89 = por %p87, %p88
      %s90 = ssub.s32 %s26, %s33
      %p91 = scmp.eq.s32.totalorder %s90, 0
      %s93 = sadd.s32 %s92, 1
      %s94 = scalar_select %p91, %s92, %s93
      %p97 = pneg %p91
      %p98 = scmp.eq.s32.totalorder %s18, 2
      %p99 = por %p97, %p98
      %p100 = scmp.ne.s32.totalorder %s92, %s95
      %p101 = scmp.eq.s32.totalorder %s18, 0
      %p102 = por %p100, %p101
      %p103 = scmp.ne.s32.totalorder %s92, %s95
      %p104 = scmp.eq.s32.totalorder %s23, 2
      %p105 = por %p103, %p104
      %p106 = scmp.ne.s32.totalorder %s95, %s96
      %p107 = scmp.eq.s32.totalorder %s23, 0
      %p108 = por %p106, %p107
      %p109 = scmp.ne.s32.totalorder %s95, %s96
      %p110 = scmp.eq.s32.totalorder %s24, 2
      %p111 = por %p109, %p110
      %p113 = scmp.ne.s32.totalorder %s96, %s112
      %p114 = scmp.eq.s32.totalorder %s24, 0
      %p115 = por %p113, %p114
      %s116 = ssub.s32 %s25, %s37
      %p117 = scmp.eq.s32.totalorder %s116, 0
      %s119 = sadd.s32 %s118, 1
      %s120 = scalar_select %p117, %s118, %s119
      %p123 = pneg %p117
      %p124 = scmp.eq.s32.totalorder %s18, 2
      %p125 = por %p123, %p124
      %p126 = scmp.ne.s32.totalorder %s118, %s121
      %p127 = scmp.eq.s32.totalorder %s18, 0
      %p128 = por %p126, %p127
      %p129 = scmp.ne.s32.totalorder %s118, %s121
      %p130 = scmp.eq.s32.totalorder %s23, 2
      %p131 = por %p129, %p130
      %p132 = scmp.ne.s32.totalorder %s121, %s122
      %p133 = scmp.eq.s32.totalorder %s23, 0
      %p134 = por %p132, %p133
      %p135 = scmp.ne.s32.totalorder %s121, %s122
      %p136 = scmp.eq.s32.totalorder %s24, 2
      %p137 = por %p135, %p136
      %p139 = scmp.ne.s32.totalorder %s122, %s138
      %p140 = scmp.eq.s32.totalorder %s24, 0
      %p141 = por %p139, %p140
      %s142 = ssub.s32 %s25, %s37
      %p143 = scmp.eq.s32.totalorder %s142, 0
      %s145 = sadd.s32 %s144, 1
      %s146 = scalar_select %p143, %s144, %s145
      %p149 = pneg %p143
      %p150 = scmp.eq.s32.totalorder %s18, 2
      %p151 = por %p149, %p150
      %p152 = scmp.ne.s32.totalorder %s144, %s147
      %p153 = scmp.eq.s32.totalorder %s18, 0
      %p154 = por %p152, %p153
      %p155 = scmp.ne.s32.totalorder %s144, %s147
      %p156 = scmp.eq.s32.totalorder %s23, 2
      %p157 = por %p155, %p156
      %p158 = scmp.ne.s32.totalorder %s147, %s148
      %p159 = scmp.eq.s32.totalorder %s23, 0
      %p160 = por %p158, %p159
      %p161 = scmp.ne.s32.totalorder %s147, %s148
      %p162 = scmp.eq.s32.totalorder %s24, 2
      %p163 = por %p161, %p162
      %p165 = scmp.ne.s32.totalorder %s148, %s164
      %p166 = scmp.eq.s32.totalorder %s24, 0
      %p167 = por %p165, %p166
      %s168 = ssub.s32 %s25, %s37
      %p169 = scmp.eq.s32.totalorder %s168, 0
      %s171 = sadd.s32 %s170, 1
      %s172 = scalar_select %p169, %s170, %s171
      %p175 = pneg %p169
      %p176 = scmp.eq.s32.totalorder %s18, 2
      %p177 = por %p175, %p176
      %p178 = scmp.ne.s32.totalorder %s170, %s173
      %p179 = scmp.eq.s32.totalorder %s18, 0
      %p180 = por %p178, %p179
      %p181 = scmp.ne.s32.totalorder %s170, %s173
      %p182 = scmp.eq.s32.totalorder %s23, 2
      %p183 = por %p181, %p182
      %p184 = scmp.ne.s32.totalorder %s173, %s174
      %p185 = scmp.eq.s32.totalorder %s23, 0
      %p186 = por %p184, %p185
      %p187 = scmp.ne.s32.totalorder %s173, %s174
      %p188 = scmp.eq.s32.totalorder %s24, 2
      %p189 = por %p187, %p188
      %p191 = scmp.ne.s32.totalorder %s174, %s190
      %p192 = scmp.eq.s32.totalorder %s24, 0
      %p193 = por %p191, %p192
      %p194 = scmp.le.s32.totalorder 1, %s18
      %p195 = scmp.lt.s32.totalorder %s18, 4
      %p196 = pnand %p194, %p195
      %p197 = pneg %p196
      // Predicated region
      $region9: #{tpu_custom_call.1} parent=5 // pred_check
        _
      $region10: #{tpu_custom_call.1} parent=5 // pred_check_branch
        %199 = sbr.rel (%p196) target = $region12
      $region11: #{tpu_custom_call.1} parent=5 // pred_region
        %s200 = ssub.s32 %s18, 1
        // Predicated region
        $region13: #{tpu_custom_call.1} parent=11 // pred_check
          %p201 = pneg %p56
        $region14: #{tpu_custom_call.1} parent=11 // pred_check_branch
          %203 = sbr.rel (%p201) target = $region16
        $region15: #{tpu_custom_call.1} parent=11 // pred_region
          %s204 = smul.u32 2, %s27
          %s206 = ssub.s32 128, 128
          %207 = vsyncadd [#allocation3], %s206
          %s208 = smul.addr %s204, 64
          %s209 = scalar_lea.hbm %s0, %s208
          %s210 = sshll.u32 [#allocation2], 4
          %s211 = int_to_ptr.vmem [resolvable:$true] %s210
          %216 = dma.hbm_to_vmem [thread:$0]  %s209, 128, %s211, [#allocation3], 64, 64, 4
        $region16: #{tpu_custom_call.1} parent=11 // pred_fallthru
          _
      $region12: #{tpu_custom_call.1} parent=5 // pred_fallthru
        _
      %p217 = scmp.lt.s32.totalorder %s18, 3
      // Predicated region
      $region17: #{tpu_custom_call.1} parent=5 // pred_check
        %p218 = pneg %p217
      $region18: #{tpu_custom_call.1} parent=5 // pred_check_branch
        %220 = sbr.rel (%p218) target = $region20
      $region19: #{tpu_custom_call.1} parent=5 // pred_region
        // Predicated region
        $region21: #{tpu_custom_call.1} parent=19 // pred_check
          %p221 = pneg %p76
        $region22: #{tpu_custom_call.1} parent=19 // pred_check_branch
          %223 = sbr.rel (%p221) target = $region24
        $region23: #{tpu_custom_call.1} parent=19 // pred_region
          %s224 = sand.u32 %s66, 1
          %s225 = scalar_lea.sflag [#allocation6], %s224
          %s226 = sand.u32 %s66, 1
          %s227 = smul.addr %s226, 16
          %s228 = scalar_lea.vmem [#allocation5], %s227
          %s230 = ssub.s32 256, 256
          %231 = vsyncadd %s225, %s230
          %s232 = smul.addr %s26, 4
          %s233 = smul.addr %s232, 64
          %s234 = scalar_lea.hbm %s1, %s233
          %s235 = sshll.u32 %s228, 4
          %s236 = int_to_ptr.vmem [resolvable:$true] %s235
          %241 = dma.hbm_to_vmem [thread:$0]  %s234, 256, %s236, %s225, 64, 64, 4
        $region24: #{tpu_custom_call.1} parent=19 // pred_fallthru
          _
        // Predicated region
        $region25: #{tpu_custom_call.1} parent=19 // pred_check
          %p242 = pneg %p102
        $region26: #{tpu_custom_call.1} parent=19 // pred_check_branch
          %244 = sbr.rel (%p242) target = $region28
        $region27: #{tpu_custom_call.1} parent=19 // pred_region
          %p245 = scmp.lt.s32.totalorder %s26, 2
          %s246 = scalar_select %p245, %s26, 2
          %s247 = scalar_lea.vmem %s2, %s246
        $region28: #{tpu_custom_call.1} parent=19 // pred_fallthru
          _
      $region20: #{tpu_custom_call.1} parent=5 // pred_fallthru
        _
      %p248 = scmp.le.s32.totalorder 1, %s18
      %p249 = scmp.lt.s32.totalorder %s18, 4
      %p250 = pnand %p248, %p249
      %p251 = pneg %p250
      // Predicated region
      $region29: #{tpu_custom_call.1} parent=5 // pred_check
        _
      $region30: #{tpu_custom_call.1} parent=5 // pred_check_branch
        %253 = sbr.rel (%p250) target = $region32
      $region31: #{tpu_custom_call.1} parent=5 // pred_region
        %s254 = ssub.s32 %s18, 1
        // Predicated region
        $region33: #{tpu_custom_call.1} parent=31 // pred_check
          %p255 = pneg %p56
        $region34: #{tpu_custom_call.1} parent=31 // pred_check_branch
          %257 = sbr.rel (%p255) target = $region36
        $region35: #{tpu_custom_call.1} parent=31 // pred_region
          %258 = dma.done [#allocation3], 128
        $region36: #{tpu_custom_call.1} parent=31 // pred_fallthru
          _
        %s259 = sand.u32 %s69, 1
        %s260 = scalar_lea.sflag [#allocation6], %s259
        %s261 = sand.u32 %s69, 1
        %s262 = smul.addr %s261, 16
        %s263 = scalar_lea.vmem [#allocation5], %s262
        // Predicated region
        $region37: #{tpu_custom_call.1} parent=31 // pred_check
          %p264 = pneg %p82
        $region38: #{tpu_custom_call.1} parent=31 // pred_check_branch
          %266 = sbr.rel (%p264) target = $region40
        $region39: #{tpu_custom_call.1} parent=31 // pred_region
          %267 = dma.done %s260, 256
        $region40: #{tpu_custom_call.1} parent=31 // pred_fallthru
          _
        %p268 = pneg %p56
        %p269 = pneg %p53
        %s270 = sand.u32 %s69, 1
        %s271 = scalar_lea.sflag [#allocation6], %s270
        %s272 = sand.u32 %s69, 1
        %s273 = smul.addr %s272, 16
        %s274 = scalar_lea.vmem [#allocation5], %s273
        %p275 = pneg %p82
        %p276 = pneg %p79
        %p277 = scmp.lt.s32.totalorder %s28, 2
        %s278 = scalar_select %p277, %s28, 2
        %s279 = scalar_lea.vmem %s2, %s278
        %p280 = pneg %p108
        %p281 = pneg %p105
        %p282 = pneg %p134
        %p283 = pneg %p131
        %p284 = pneg %p160
        %p285 = pneg %p157
        %p286 = pneg %p186
        %p287 = pneg %p183
        %s288 = smul.u32 2, %s27
        %p289 = scmp.lt.s32.totalorder %s28, 2
        %s290 = scalar_select %p289, %s28, 2
        %s291 = scalar_lea.vmem %s2, %s290
        %s292 = smul.u32 2, %s27
        %s293 = smul.u32 2, %s27
        %s294 = smul.u32 2, %s27
        %v296 = vld [vmem:[#allocation2] sm:$0xf]
        %v297 = vld [vmem:[#allocation2 + $0x4] sm:$0xf]
        %v298 = vld [vmem:[%s263] sm:$0xf]
        %v299 = vld [vmem:[%s263 + $0x4] sm:$0xf]
        %v300 = vld [vmem:[%s263 + $0x8] sm:$0xf]
        %v301 = vld [vmem:[%s263 + $0xc] sm:$0xf]
        %v302 = vld [vmem:[%s291] sm:$0x1]
        %v304 = vlaneseq
        %v305 = vshrl.u32 %v304, 7
        %v306 = vsub.s32 0, %v305
        %v307 = vrot.slane %v302, %v306
        %v311 = vunpack.c.l.b16 %v296
        %v312 = vunpack.c.l.b16 %v297
        %v313 = vpack.c.b16 %v312, %v311
        %v318 = vunpack.c.l.b16 %v298
        %v319 = vunpack.c.l.b16 %v299
        %v320 = vunpack.c.l.b16 %v300
        %v321 = vunpack.c.l.b16 %v301
        %v322 = vpack.c.b16 %v319, %v318
        %v323 = vpack.c.b16 %v321, %v320
        %vm326 = vcmask 261120
        %v328 = vsel %vm326, %v313, 0
        %330 = vmatprep.subr.bf16.mxu0 0
        %331 = vmatpush1.bf16.msra.mxu0 %v322
        %332 = vmatprep.subr.bf16.mxu0 0
        %333 = vmatpush1.bf16.msra.mxu0 %v323
        %334 = vmatprep.subr.bf16.mxu0 0
        %335 = vmatpush1.bf16.msra.mxu0 0
        %336 = vmatprep.subr.bf16.mxu0 0
        %337 = vmatpush1.bf16.msra.mxu0 0
        %338 = vmatprep.subr.bf16.mxu0 0
        %339 = vmatpush1.bf16.msra.mxu0 0
        %340 = vmatprep.subr.bf16.mxu0 0
        %341 = vmatpush1.bf16.msra.mxu0 0
        %342 = vmatprep.subr.bf16.mxu0 0
        %343 = vmatpush1.bf16.msra.mxu0 0
        %344 = vmatprep.subr.bf16.mxu0 0
        %345 = vmatpush1.bf16.msra.mxu0 0
        %346 = vmatprep.subr.bf16.mxu0 0
        %347 = vmatpush1.bf16.msra.mxu0 0
        %348 = vmatprep.subr.bf16.mxu0 0
        %349 = vmatpush1.bf16.msra.mxu0 0
        %350 = vmatprep.subr.bf16.mxu0 0
        %351 = vmatpush1.bf16.msra.mxu0 0
        %352 = vmatprep.subr.bf16.mxu0 0
        %353 = vmatpush1.bf16.msra.mxu0 0
        %354 = vmatprep.subr.bf16.mxu0 0
        %355 = vmatpush1.bf16.msra.mxu0 0
        %356 = vmatprep.subr.bf16.mxu0 0
        %357 = vmatpush1.bf16.msra.mxu0 0
        %358 = vmatprep.subr.bf16.mxu0 0
        %359 = vmatpush1.bf16.msra.mxu0 0
        %360 = vmatprep.subr.bf16.mxu0 0
        %361 = vmatpush1.bf16.msra.mxu0 0
        %362 = vmatprep.mubr.bf16.mxu0 0
        %363 = vmatmul.mubr.bf16.gmra.mrb[0].mxu0 %v328
        %v364 = vpop.f32.mrb[0].mxu0
        %v365 = vadd.f32 %v307, %v364
        %v366 = vpop.f32.mrb[0].mxu0
        %v367 = vpop.f32.mrb[0].mxu0
        %v368 = vadd.f32 %v307, %v367
        %v369 = vpop.f32.mrb[0].mxu0
        %370 = vdwg.mxu0
        %p371 = scmp.eq.s32.totalorder %s28, 0
        // Predicated region
        $region41: #{tpu_custom_call.1} parent=31 // pred_check
          %p372 = pneg %p371
        $region42: #{tpu_custom_call.1} parent=31 // pred_check_branch
          %374 = sbr.rel (%p372) target = $region44
        $region43: #{tpu_custom_call.1} parent=31 // pred_region
          %v375 = vmul.f32 %v365, 0.35355338
          %v376 = vmul.f32 %v368, 0.35355338
          %v377 = vpack.c.bf16 %v376, %v375
          %v379 = vunpack.c.l.b16 %v377
          %v380 = vunpack.c.h.b16 %v377
          %v381 = vpack.c.b16 %v379, %v379
          %v382 = vpack.c.b16 %v380, %v380
          %vm385 = vcmask 257024
          %386 = vst.msk [vmem:[#allocation7] sm:$0xf] %vm385, %v381
          %387 = vst.msk [vmem:[#allocation7 + $0x4] sm:$0xf] %vm385, %v382
        $region44: #{tpu_custom_call.1} parent=31 // pred_fallthru
          _
        %p388 = scmp.eq.s32.totalorder %s28, 1
        // Predicated region
        $region45: #{tpu_custom_call.1} parent=31 // pred_check
          %p389 = pneg %p388
        $region46: #{tpu_custom_call.1} parent=31 // pred_check_branch
          %391 = sbr.rel (%p389) target = $region48
        $region47: #{tpu_custom_call.1} parent=31 // pred_region
          %v392 = vpack.c.bf16 %v368, %v365
          %v394 = vunpack.c.l.b16 %v392
          %v395 = vunpack.c.h.b16 %v392
          %v396 = vpack.c.b16 %v394, %v394
          %v397 = vpack.c.b16 %v395, %v395
          %vm400 = vcmask 257024
          %401 = vst.msk [vmem:[#allocation8] sm:$0xf] %vm400, %v396
          %402 = vst.msk [vmem:[#allocation8 + $0x4] sm:$0xf] %vm400, %v397
        $region48: #{tpu_custom_call.1} parent=31 // pred_fallthru
          _
        %p403 = scmp.eq.s32.totalorder %s28, 2
        // Predicated region
        $region49: #{tpu_custom_call.1} parent=31 // pred_check
          %p404 = pneg %p403
        $region50: #{tpu_custom_call.1} parent=31 // pred_check_branch
          %406 = sbr.rel (%p404) target = $region52
        $region51: #{tpu_custom_call.1} parent=31 // pred_region
          %v407 = vpack.c.bf16 %v368, %v365
          %v409 = vunpack.c.l.b16 %v407
          %v410 = vunpack.c.h.b16 %v407
          %v411 = vpack.c.b16 %v409, %v409
          %v412 = vpack.c.b16 %v410, %v410
          %vm415 = vcmask 257024
          %416 = vst.msk [vmem:[#allocation10] sm:$0xf] %vm415, %v411
          %417 = vst.msk [vmem:[#allocation10 + $0x4] sm:$0xf] %vm415, %v412
        $region52: #{tpu_custom_call.1} parent=31 // pred_fallthru
          _
        // Predicated region
        $region53: #{tpu_custom_call.1} parent=31 // pred_check
          %p418 = pneg %p131
        $region54: #{tpu_custom_call.1} parent=31 // pred_check_branch
          %420 = sbr.rel (%p418) target = $region56
        $region55: #{tpu_custom_call.1} parent=31 // pred_region
          %s421 = smul.u32 2, %s27
          %s423 = ssub.s32 128, 128
          %424 = vsyncadd [#allocation4], %s423
          %s425 = smul.addr %s421, 64
          %s426 = scalar_lea.hbm %s3, %s425
          %s427 = sshll.u32 [#allocation7], 4
          %s428 = int_to_ptr.vmem [resolvable:$true] %s427
          %433 = dma.vmem_to_hbm [thread:$0]  %s428, 128, %s426, [#allocation4], 64, 64, 4
        $region56: #{tpu_custom_call.1} parent=31 // pred_fallthru
          _
        // Predicated region
        $region57: #{tpu_custom_call.1} parent=31 // pred_check
          %p434 = pneg %p157
        $region58: #{tpu_custom_call.1} parent=31 // pred_check_branch
          %436 = sbr.rel (%p434) target = $region60
        $region59: #{tpu_custom_call.1} parent=31 // pred_region
          %s437 = smul.u32 2, %s27
          %s439 = ssub.s32 128, 128
          %440 = vsyncadd [#allocation9], %s439
          %s441 = smul.addr %s437, 64
          %s442 = scalar_lea.hbm %s4, %s441
          %s443 = sshll.u32 [#allocation8], 4
          %s444 = int_to_ptr.vmem [resolvable:$true] %s443
          %449 = dma.vmem_to_hbm [thread:$0]  %s444, 128, %s442, [#allocation9], 64, 64, 4
        $region60: #{tpu_custom_call.1} parent=31 // pred_fallthru
          _
        // Predicated region
        $region61: #{tpu_custom_call.1} parent=31 // pred_check
          %p450 = pneg %p183
        $region62: #{tpu_custom_call.1} parent=31 // pred_check_branch
          %452 = sbr.rel (%p450) target = $region64
        $region63: #{tpu_custom_call.1} parent=31 // pred_region
          %s453 = smul.u32 2, %s27
          %s455 = ssub.s32 128, 128
          %456 = vsyncadd [#allocation9], %s455
          %s457 = smul.addr %s453, 64
          %s458 = scalar_lea.hbm %s5, %s457
          %s459 = sshll.u32 [#allocation10], 4
          %s460 = int_to_ptr.vmem [resolvable:$true] %s459
          %465 = dma.vmem_to_hbm [thread:$0]  %s460, 128, %s458, [#allocation9], 64, 64, 4
        $region64: #{tpu_custom_call.1} parent=31 // pred_fallthru
          _
        // Predicated region
        $region65: #{tpu_custom_call.1} parent=31 // pred_check
          %p466 = pneg %p131
        $region66: #{tpu_custom_call.1} parent=31 // pred_check_branch
          %468 = sbr.rel (%p466) target = $region68
        $region67: #{tpu_custom_call.1} parent=31 // pred_region
          %469 = dma.done [#allocation4], 128
        $region68: #{tpu_custom_call.1} parent=31 // pred_fallthru
          _
        // Predicated region
        $region69: #{tpu_custom_call.1} parent=31 // pred_check
          %p470 = pneg %p157
        $region70: #{tpu_custom_call.1} parent=31 // pred_check_branch
          %472 = sbr.rel (%p470) target = $region72
        $region71: #{tpu_custom_call.1} parent=31 // pred_region
          %473 = dma.done [#allocation9], 128
        $region72: #{tpu_custom_call.1} parent=31 // pred_fallthru
          _
        // Predicated region
        $region73: #{tpu_custom_call.1} parent=31 // pred_check
          %p474 = pneg %p183
        $region74: #{tpu_custom_call.1} parent=31 // pred_check_branch
          %476 = sbr.rel (%p474) target = $region76
        $region75: #{tpu_custom_call.1} parent=31 // pred_region
          %477 = dma.done [#allocation9], 128
        $region76: #{tpu_custom_call.1} parent=31 // pred_fallthru
          _
      $region32: #{tpu_custom_call.1} parent=5 // pred_fallthru
        _
      %p478 = scmp.le.s32.totalorder 2, %s18
      // Predicated region
      $region77: #{tpu_custom_call.1} parent=5 // pred_check
        %p479 = pneg %p478
      $region78: #{tpu_custom_call.1} parent=5 // pred_check_branch
        %481 = sbr.rel (%p479) target = $region80
      $region79: #{tpu_custom_call.1} parent=5 // pred_region
        %s482 = ssub.s32 %s18, 2
      $region80: #{tpu_custom_call.1} parent=5 // pred_fallthru
        _
    $region6: #{tpu_custom_call.1} parent=1 // loop_footer
      %s22 = sadd.s32 1, %s18
    $region7: #{tpu_custom_call.1} parent=1 // loop_footer_branch
      %17 = sbr.rel target = $region3
    $region8: #{tpu_custom_call.1} parent=1 // loop_exit
      _
    %483 = vsyncpa [#allocation3], 1
    %s484 = scalar_lea.sflag [#allocation3], 1
    %485 = vsyncpa %s484, 1
    %486 = vsyncpa [#allocation6], 1
    %s487 = scalar_lea.sflag [#allocation6], 1
    %488 = vsyncpa %s487, 1
    %489 = vsyncpa [#allocation4], 1
    %s490 = scalar_lea.sflag [#allocation4], 1
    %491 = vsyncpa %s490, 1
    %492 = vsyncpa [#allocation9], 1

</llo_original>
